<compile_context>
chip_gen: v7x
topology: tpu7x:2x2x1
jax: 0.10.0
libtpu: 0.0.40
codegen_flags: <defaults>
</compile_context>

<pallas_src>
import functools

import jax
import jax.numpy as jnp
from jax import lax
from jax.experimental import pallas as pl
from jax.experimental.pallas import tpu as pltpu
import numpy as np


def pam_kernel(x_ref, xpt_ref, xpa_ref, bmat_ref, wcol_ref, wg_ref, bg_ref,
               out_ref, *, use_bf16_exp):
    # x_ref    : (1, C, TQ)        f32   channel-major query tile (also residual)
    # xpt_ref  : (1, HWp_pad, Ca)  bf16  pooled features, transposed + augmented
    # xpa_ref  : (1, Ca, HWp_pad)  bf16  pooled features, augmented (row C = ones)
    # bmat_ref : (Ca, C)           bf16  (Wq Wk^T)^T, zero-padded to Ca rows
    # wcol_ref : (Ca, 1)           f32   folded key bias Wk @ bq, zero-padded
    # wg_ref   : (C, 1)            f32   gamma 1x1 conv weight
    # bg_ref   : (1, 1)            f32   gamma bias (SMEM scalar)
    x = x_ref[0]                                           # (C, TQ) f32
    num_c = x.shape[0]

    # t2[a, i] = sum_c Bmat[a, c] * x[c, i]  -> (Ca, TQ); canonical bf16 MXU dot.
    t2 = lax.dot_general(bmat_ref[...], x.astype(jnp.bfloat16),
                         (((1,), (0,)), ((), ())),
                         preferred_element_type=jnp.float32)
    # Fold the key-bias term here (tiny (Ca,1) broadcast add, not a (key,query) pass).
    t2 = (t2 + wcol_ref[...]).astype(jnp.bfloat16)         # (Ca, TQ) bf16

    # energyT[j, i] = x_i^T A xp_j + (Wk bq)^T xp_j -> (HWp_pad, TQ); canonical dot.
    energy = lax.dot_general(xpt_ref[0], t2, (((1,), (0,)), ((), ())),
                             preferred_element_type=jnp.float32)

    # Softmax over the key axis (axis 0). Padded keys have energy 0, but their
    # value rows and ones-row entries are 0, so they are inert in num and denom.
    m = jnp.max(energy, axis=0, keepdims=True)             # (1, TQ)
    shifted = energy - m
    if use_bf16_exp:                                       # v6e / v7x: bf16 EUP path
        e = jnp.exp(shifted.astype(jnp.bfloat16))
    else:                                                  # v5e and older: f32 exp
        e = jnp.exp(shifted).astype(jnp.bfloat16)          # (HWp_pad, TQ) bf16

    # out_aug[a, i] = sum_j xp_aug[a, j] * e[j, i] -> (Ca, TQ); canonical dot.
    # Row `num_c` (the ones row) is the softmax denominator.
    out_aug = lax.dot_general(xpa_ref[0], e, (((1,), (0,)), ((), ())),
                              preferred_element_type=jnp.float32)
    inv_l = pl.reciprocal(out_aug[num_c:num_c + 1, :], approx=True)   # (1, TQ)
    attn = out_aug[:num_c, :] * inv_l                                 # (C, TQ)

    # gamma gate: 1-channel 1x1 conv + sigmoid, done on the VPU (an M=1 f32
    # matmul would waste an MXU result-path pass).
    g_lin = jnp.sum(wg_ref[...] * x, axis=0, keepdims=True)           # (1, TQ)
    g = jax.nn.sigmoid(g_lin + bg_ref[0, 0])

    out_ref[0] = (1.0 - g) * attn + g * x


def pam_module_forward(x, wq, bq, wk, bk, wg, bg, *, tq=None):
    """x: (B, C, H, W) float32 NCHW (like the PyTorch module). Returns NCHW f32.

    Conv weights are stored as (in, out). bk only shifts each energy row by a
    per-row constant, so it cancels inside the softmax; it is kept as an
    argument for interface parity with the module.
    """
    B, C, H, W = x.shape
    assert H % 2 == 0 and W % 2 == 0, "MaxPool2d(kernel_size=2) needs even H, W"
    Hp, Wp = H // 2, W // 2
    HW, HWp = H * W, Hp * Wp

    # --- chip-generation specific knobs (perf only, never affects semantics) ---
    kind = jax.devices()[0].device_kind.lower()
    is_v7 = "v7" in kind
    use_bf16_exp = ("v6" in kind) or is_v7              # bf16 EUP only on v6e/v7x
    vmem_cap = (56 if is_v7 else 100) * 1024 * 1024     # 64 MiB vs 128 MiB physical
    tq_cap = tq if tq is not None else (512 if is_v7 else 1024)

    # --- padded, lane/sublane-friendly geometry ---
    HW_pad = ((HW + 127) // 128) * 128                  # query / output lane axis
    HWp_pad = ((HWp + 127) // 128) * 128                # key axis
    Ca = ((C + 1 + 15) // 16) * 16                      # augmented channels (ones row + pad)

    # 2x2 max pool (stride 2, NCHW) + channel-major flattening (pure reshapes).
    xp = x.reshape(B, C, Hp, 2, Wp, 2).max(axis=(3, 5))
    x_cm = x.reshape(B, C, HW)
    if HW_pad != HW:
        x_cm = jnp.pad(x_cm, ((0, 0), (0, 0), (0, HW_pad - HW)))

    # Augmented pooled features: rows [0:C] = xp, row C = ones (row-sum trick),
    # rows > C zero; padded key columns are all-zero (incl. ones row) => inert.
    xp_cm = xp.reshape(B, C, HWp)
    xp_aug = jnp.concatenate(
        [xp_cm,
         jnp.ones((B, 1, HWp), xp_cm.dtype),
         jnp.zeros((B, Ca - C - 1, HWp), xp_cm.dtype)], axis=1)
    xp_aug = jnp.pad(xp_aug, ((0, 0), (0, 0), (0, HWp_pad - HWp)))
    xp_aug = xp_aug.astype(jnp.bfloat16)                # (B, Ca, HWp_pad)
    xp_t = jnp.swapaxes(xp_aug, 1, 2)                   # (B, HWp_pad, Ca), one-time XLA transpose

    # Fold the query/key 1x1 convs:
    #   softmax_j(q_i . k_j) == softmax_j(x_i^T A xp_j + (Wk bq)^T xp_j), A = Wq Wk^T.
    # Passed transposed (A^T = Wk Wq^T) so every in-kernel dot stays canonical.
    bmat = jnp.concatenate(
        [(wk @ wq.T).astype(jnp.float32), jnp.zeros((Ca - C, C), jnp.float32)],
        axis=0).astype(jnp.bfloat16)                    # (Ca, C) bf16
    wcol = jnp.concatenate(
        [(wk @ bq).astype(jnp.float32), jnp.zeros((Ca - C,), jnp.float32)]
    ).reshape(Ca, 1)                                    # (Ca, 1) f32

    bg_smem = bg.reshape(1, 1).astype(jnp.float32)

    # --- query-tile size and VMEM budget (generation specific) ---
    def vmem_est(tq_):
        f32b, bf16b = 4, 2
        return (2 * 2 * C * tq_ * f32b                  # x in + out (double-buffered)
                + 2 * 2 * Ca * HWp_pad * bf16b          # xp_t + xp_aug (double-buffered)
                + HWp_pad * tq_ * (f32b + bf16b)        # energy f32 + e bf16
                + Ca * tq_ * (2 * f32b + bf16b)         # t2 f32/bf16, out_aug f32
                + C * tq_ * (bf16b + 2 * f32b)          # x bf16 cast, attn, gate temps
                + 2 * (Ca * C * bf16b + (Ca + C) * f32b))

    tq_ = max(128, (min(tq_cap, HW_pad) // 128) * 128)
    while tq_ > 128 and (HW_pad % tq_ != 0 or 3 * vmem_est(tq_) // 2 > vmem_cap):
        tq_ -= 128
    n_q = HW_pad // tq_
    vmem_limit = int(min(vmem_cap, max(32 * 1024 * 1024, 3 * vmem_est(tq_) // 2)))

    # TODO(synk): for very large pooled key counts (HWp >~ 8K) on v7x, add a third
    # "arbitrary" grid axis over the key dim with flash-style online-softmax
    # scratch instead of materializing the full (HWp_pad, TQ) energy tile; and
    # consider pipeline_mode=pl.Buffered(1) on the per-batch-resident inputs.

    kernel = functools.partial(pam_kernel, use_bf16_exp=use_bf16_exp)

    out_cm = pl.pallas_call(
        kernel,
        out_shape=jax.ShapeDtypeStruct((B, C, HW_pad), jnp.float32),
        grid_spec=pltpu.PrefetchScalarGridSpec(
            num_scalar_prefetch=0,
            grid=(B, n_q),
            in_specs=[
                pl.BlockSpec((1, C, tq_), lambda b, q: (b, 0, q)),        # x tile
                pl.BlockSpec((1, HWp_pad, Ca), lambda b, q: (b, 0, 0)),   # xp^T (resident per batch)
                pl.BlockSpec((1, Ca, HWp_pad), lambda b, q: (b, 0, 0)),   # xp_aug (resident per batch)
                pl.BlockSpec((Ca, C), lambda b, q: (0, 0)),               # (Wq Wk^T)^T
                pl.BlockSpec((Ca, 1), lambda b, q: (0, 0)),               # Wk @ bq
                pl.BlockSpec((C, 1), lambda b, q: (0, 0)),                # Wg
                pl.BlockSpec(memory_space=pltpu.MemorySpace.SMEM),        # bg scalar
            ],
            out_specs=pl.BlockSpec((1, C, tq_), lambda b, q: (b, 0, q)),
        ),
        compiler_params=pltpu.CompilerParams(
            dimension_semantics=("parallel", "parallel"),
            vmem_limit_bytes=vmem_limit,
        ),
    )(x_cm, xp_t, xp_aug, bmat, wcol, wg, bg_smem)

    return out_cm[:, :, :HW].reshape(B, C, H, W)


def reference_forward(x, wq, bq, wk, bk, wg, bg):
    """Pure-JAX reference mirroring the PyTorch forward (NCHW, unfused weights)."""
    B, C, H, W = x.shape
    Hp, Wp = H // 2, W // 2
    xp = x.reshape(B, C, Hp, 2, Wp, 2).max(axis=(3, 5))

    q = jnp.einsum('bchw,ck->bkhw', x, wq) + bq[None, :, None, None]
    k = jnp.einsum('bchw,ck->bkhw', xp, wk) + bk[None, :, None, None]

    proj_query = q.reshape(B, -1, H * W).transpose(0, 2, 1)          # (B, HW, K)
    proj_key = k.reshape(B, -1, Hp * Wp)                             # (B, K, HWp)
    energy = jnp.einsum('bik,bkj->bij', proj_query, proj_key)        # (B, HW, HWp)
    attention = jax.nn.softmax(energy, axis=-1)

    proj_value = xp.reshape(B, C, Hp * Wp)                           # (B, C, HWp)
    out = jnp.einsum('bcj,bij->bci', proj_value, attention)          # (B, C, HW)
    out = out.reshape(B, C, H, W)

    gamma = jax.nn.sigmoid(
        jnp.einsum('bchw,co->bohw', x, wg) + bg[None, :, None, None])  # (B,1,H,W)
    return (1.0 - gamma) * out + gamma * x


if __name__ == "__main__":
    # Small, module-consistent shapes: B=2, C(in_dim)=4, H=W=16, key_dim=4.
    B, C, H, W = 2, 4, 16, 16
    key_dim = 4

    root = jax.random.PRNGKey(0)
    kx, kwq, kbq, kwk, kbk, kwg, kbg = jax.random.split(root, 7)

    x = jax.random.normal(kx, (B, C, H, W), dtype=jnp.float32)

    # Conv2d weights (out, in, 1, 1) stored already transposed as (in, out).
    wq = 0.1 * jax.random.normal(kwq, (C, key_dim), dtype=jnp.float32)
    bq = 0.1 * jax.random.normal(kbq, (key_dim,), dtype=jnp.float32)
    wk = 0.1 * jax.random.normal(kwk, (C, key_dim), dtype=jnp.float32)
    bk = 0.1 * jax.random.normal(kbk, (key_dim,), dtype=jnp.float32)
    wg = 0.1 * jax.random.normal(kwg, (C, 1), dtype=jnp.float32)
    bg = 0.1 * jax.random.normal(kbg, (1,), dtype=jnp.float32)

    # tq=128 exercises the tiled query axis (grid = (2, 2)) plus key-axis padding
    # (HWp = 64 -> 128) and augmented-channel padding (5 -> 16).
    out = pam_module_forward(x, wq, bq, wk, bk, wg, bg, tq=128)
    out = jax.block_until_ready(out)

    ref = jax.block_until_ready(reference_forward(x, wq, bq, wk, bk, wg, bg))
    # bf16 MXU inputs + (possibly) bf16 exp + approx reciprocal => bf16-level tolerance.
    np.testing.assert_allclose(np.asarray(out), np.asarray(ref),
                               rtol=3e-2, atol=3e-2)

    print("KERNEL_OK")
</pallas_src>

<mosaic_0001>
module attributes {stable_mosaic.version = 11 : i64} {
  func.func @pam_kernel(%arg0: i32, %arg1: i32, %arg2: memref<1x4x128xf32, #tpu.memory_space<vmem>>, %arg3: memref<1x128x16xbf16, #tpu.memory_space<vmem>>, %arg4: memref<1x16x128xbf16, #tpu.memory_space<vmem>>, %arg5: memref<16x4xbf16, #tpu.memory_space<vmem>>, %arg6: memref<16x1xf32, #tpu.memory_space<vmem>>, %arg7: memref<4x1xf32, #tpu.memory_space<vmem>>, %arg8: memref<1x1xf32, #tpu.memory_space<smem>>, %arg9: memref<1x4x128xf32, #tpu.memory_space<vmem>>) attributes {dimension_semantics = [#tpu.dimension_semantics<parallel>, #tpu.dimension_semantics<parallel>], iteration_bounds = array<i64: 2, 2>, scalar_prefetch = 0 : i64, scratch_operands = 0 : i64, tpu.core_type = #tpu.core_type<tc>, window_params = [{transform_indices = @transform_0, window_bounds = array<i64: 1, 4, 128>}, {transform_indices = @transform_1, window_bounds = array<i64: 1, 128, 16>}, {transform_indices = @transform_2, window_bounds = array<i64: 1, 16, 128>}, {pipeline_mode = #tpu.pipeline_mode<synchronous>, transform_indices = @transform_3, window_bounds = array<i64: 16, 4>}, {pipeline_mode = #tpu.pipeline_mode<synchronous>, transform_indices = @transform_4, window_bounds = array<i64: 16, 1>}, {pipeline_mode = #tpu.pipeline_mode<synchronous>, transform_indices = @transform_5, window_bounds = array<i64: 4, 1>}, {transform_indices = @transform_6, window_bounds = array<i64: 1, 1>}, {transform_indices = @transform_7, window_bounds = array<i64: 1, 4, 128>}]} {
    %c0 = arith.constant 0 : index
    %c0_0 = arith.constant 0 : index
    %c0_1 = arith.constant 0 : index
    %0 = vector.load %arg2[%c0, %c0_0, %c0_1] : memref<1x4x128xf32, #tpu.memory_space<vmem>>, vector<1x4x128xf32>
    %1 = vector.shape_cast %0 : vector<1x4x128xf32> to vector<4x128xf32>
    %c0_2 = arith.constant 0 : index
    %c0_3 = arith.constant 0 : index
    %2 = vector.load %arg5[%c0_2, %c0_3] : memref<16x4xbf16, #tpu.memory_space<vmem>>, vector<16x4xbf16>
    %3 = arith.truncf %1 : vector<4x128xf32> to vector<4x128xbf16>
    %cst = arith.constant dense<0.000000e+00> : vector<16x128xf32>
    %4 = tpu.matmul %2, %3, %cst {dimension_numbers = #tpu.dot_dimension_numbers<[1], [0], [0], [1], [0, 0, 1, 1], [], []>} : vector<16x4xbf16>, vector<4x128xbf16>, vector<16x128xf32> -> vector<16x128xf32>
    %c0_4 = arith.constant 0 : index
    %c0_5 = arith.constant 0 : index
    %5 = vector.load %arg6[%c0_4, %c0_5] : memref<16x1xf32, #tpu.memory_space<vmem>>, vector<16x1xf32>
    %6 = vector.broadcast %5 : vector<16x1xf32> to vector<16x128xf32>
    %7 = arith.addf %4, %6 : vector<16x128xf32>
    %8 = arith.truncf %7 : vector<16x128xf32> to vector<16x128xbf16>
    %c0_6 = arith.constant 0 : index
    %c0_7 = arith.constant 0 : index
    %c0_8 = arith.constant 0 : index
    %9 = vector.load %arg3[%c0_6, %c0_7, %c0_8] : memref<1x128x16xbf16, #tpu.memory_space<vmem>>, vector<1x128x16xbf16>
    %10 = vector.shape_cast %9 : vector<1x128x16xbf16> to vector<128x16xbf16>
    %cst_9 = arith.constant dense<0.000000e+00> : vector<128x128xf32>
    %11 = tpu.matmul %10, %8, %cst_9 {dimension_numbers = #tpu.dot_dimension_numbers<[1], [0], [0], [1], [0, 0, 1, 1], [], []>} : vector<128x16xbf16>, vector<16x128xbf16>, vector<128x128xf32> -> vector<128x128xf32>
    %cst_10 = arith.constant dense<0xFF800000> : vector<128xf32>
    %12 = vector.multi_reduction <maximumf>, %11, %cst_10 [0] : vector<128x128xf32> to vector<128xf32>
    %13 = vector.shape_cast %12 : vector<128xf32> to vector<1x128xf32>
    %14 = vector.broadcast %13 : vector<1x128xf32> to vector<128x128xf32>
    %15 = arith.subf %11, %14 : vector<128x128xf32>
    %16 = math.exp %15 : vector<128x128xf32>
    %17 = arith.truncf %16 : vector<128x128xf32> to vector<128x128xbf16>
    %c0_11 = arith.constant 0 : index
    %c0_12 = arith.constant 0 : index
    %c0_13 = arith.constant 0 : index
    %18 = vector.load %arg4[%c0_11, %c0_12, %c0_13] : memref<1x16x128xbf16, #tpu.memory_space<vmem>>, vector<1x16x128xbf16>
    %19 = vector.shape_cast %18 : vector<1x16x128xbf16> to vector<16x128xbf16>
    %cst_14 = arith.constant dense<0.000000e+00> : vector<16x128xf32>
    %20 = tpu.matmul %19, %17, %cst_14 {dimension_numbers = #tpu.dot_dimension_numbers<[1], [0], [0], [1], [0, 0, 1, 1], [], []>} : vector<16x128xbf16>, vector<128x128xbf16>, vector<16x128xf32> -> vector<16x128xf32>
    %21 = vector.extract_strided_slice %20 {offsets = [4, 0], sizes = [1, 128], strides = [1, 1]} : vector<16x128xf32> to vector<1x128xf32>
    %22 = tpu.reciprocal %21 {approx = true} : vector<1x128xf32> -> vector<1x128xf32>
    %23 = vector.extract_strided_slice %20 {offsets = [0, 0], sizes = [4, 128], strides = [1, 1]} : vector<16x128xf32> to vector<4x128xf32>
    %24 = vector.broadcast %22 : vector<1x128xf32> to vector<4x128xf32>
    %25 = arith.mulf %23, %24 : vector<4x128xf32>
    %c0_15 = arith.constant 0 : index
    %c0_16 = arith.constant 0 : index
    %26 = vector.load %arg7[%c0_15, %c0_16] : memref<4x1xf32, #tpu.memory_space<vmem>>, vector<4x1xf32>
    %27 = vector.broadcast %26 : vector<4x1xf32> to vector<4x128xf32>
    %28 = arith.mulf %27, %1 : vector<4x128xf32>
    %cst_17 = arith.constant dense<0.000000e+00> : vector<128xf32>
    %29 = vector.multi_reduction <add>, %28, %cst_17 [0] : vector<4x128xf32> to vector<128xf32>
    %30 = vector.shape_cast %29 : vector<128xf32> to vector<1x128xf32>
    %c0_18 = arith.constant 0 : index
    %c0_19 = arith.constant 0 : index
    %31 = memref.load %arg8[%c0_18, %c0_19] : memref<1x1xf32, #tpu.memory_space<smem>>
    %32 = vector.broadcast %31 : f32 to vector<1x128xf32>
    %33 = arith.addf %30, %32 : vector<1x128xf32>
    %34 = arith.negf %33 : vector<1x128xf32>
    %35 = math.exp %34 : vector<1x128xf32>
    %cst_20 = arith.constant 1.000000e+00 : f32
    %36 = vector.broadcast %cst_20 : f32 to vector<1x128xf32>
    %37 = arith.addf %36, %35 : vector<1x128xf32>
    %38 = arith.divf %36, %37 : vector<1x128xf32>
    %cst_21 = arith.constant 1.000000e+00 : f32
    %39 = vector.broadcast %cst_21 : f32 to vector<1x128xf32>
    %40 = arith.subf %39, %38 : vector<1x128xf32>
    %41 = vector.broadcast %40 : vector<1x128xf32> to vector<4x128xf32>
    %42 = arith.mulf %41, %25 : vector<4x128xf32>
    %43 = vector.broadcast %38 : vector<1x128xf32> to vector<4x128xf32>
    %44 = arith.mulf %43, %1 : vector<4x128xf32>
    %45 = arith.addf %42, %44 : vector<4x128xf32>
    %c0_22 = arith.constant 0 : index
    %c0_23 = arith.constant 0 : index
    %c0_24 = arith.constant 0 : index
    %46 = vector.load %arg9[%c0_22, %c0_23, %c0_24] : memref<1x4x128xf32, #tpu.memory_space<vmem>>, vector<1x4x128xf32>
    %47 = vector.shape_cast %46 : vector<1x4x128xf32> to vector<4x128xf32>
    %48 = vector.shape_cast %45 : vector<4x128xf32> to vector<1x4x128xf32>
    tpu.vector_store %arg9[%c0_22, %c0_23, %c0_24], %48 {strides = array<i32>} : memref<1x4x128xf32, #tpu.memory_space<vmem>>, vector<1x4x128xf32>,
    return
  }
  func.func @transform_0(%arg0: i32, %arg1: i32) -> (i32, i32, i32) {
    %c0_i32 = arith.constant 0 : i32
    %c0_i32_0 = arith.constant 0 : i32
    return %arg0, %c0_i32, %arg1 : i32, i32, i32
  }
  func.func @transform_1(%arg0: i32, %arg1: i32) -> (i32, i32, i32) {
    %c0_i32 = arith.constant 0 : i32
    %c0_i32_0 = arith.constant 0 : i32
    %c0_i32_1 = arith.constant 0 : i32
    return %arg0, %c0_i32, %c0_i32_0 : i32, i32, i32
  }
  func.func @transform_2(%arg0: i32, %arg1: i32) -> (i32, i32, i32) {
    %c0_i32 = arith.constant 0 : i32
    %c0_i32_0 = arith.constant 0 : i32
    %c0_i32_1 = arith.constant 0 : i32
    return %arg0, %c0_i32, %c0_i32_0 : i32, i32, i32
  }
  func.func @transform_3(%arg0: i32, %arg1: i32) -> (i32, i32) {
    %c0_i32 = arith.constant 0 : i32
    %c0_i32_0 = arith.constant 0 : i32
    %c0_i32_1 = arith.constant 0 : i32
    return %c0_i32, %c0_i32_0 : i32, i32
  }
  func.func @transform_4(%arg0: i32, %arg1: i32) -> (i32, i32) {
    %c0_i32 = arith.constant 0 : i32
    %c0_i32_0 = arith.constant 0 : i32
    %c0_i32_1 = arith.constant 0 : i32
    return %c0_i32, %c0_i32_0 : i32, i32
  }
  func.func @transform_5(%arg0: i32, %arg1: i32) -> (i32, i32) {
    %c0_i32 = arith.constant 0 : i32
    %c0_i32_0 = arith.constant 0 : i32
    %c0_i32_1 = arith.constant 0 : i32
    return %c0_i32, %c0_i32_0 : i32, i32
  }
  func.func @transform_6(%arg0: i32, %arg1: i32) -> (i32, i32) {
    %c0_i32 = arith.constant 0 : i32
    %c0_i32_0 = arith.constant 0 : i32
    %c0_i32_1 = arith.constant 0 : i32
    return %c0_i32, %c0_i32_0 : i32, i32
  }
  func.func @transform_7(%arg0: i32, %arg1: i32) -> (i32, i32, i32) {
    %c0_i32 = arith.constant 0 : i32
    %c0_i32_0 = arith.constant 0 : i32
    return %arg0, %c0_i32, %arg1 : i32, i32, i32
  }
}

</mosaic_0001>

<llo_original>
// kernel: tpu_custom_call.1
$region0: #{tpu_custom_call.1}
  #allocation0 [shape = 'u32[]', space=smem, size = 0x4, offset = 0x4, fixed_abs, tag = 'smem constant byte address 0x4 - core index']
  #allocation1 [shape = 'u32[144,128]{1,0:T(1,128)}', space=vmem, size = 0x12000, scoped, tag = 'internal scratch']
  #allocation2 [shape = 'f32[1,1]{1,0:T(1,128)S(6)}', space=smem, size = 0x200, scoped, tag = 'scoped memory for tpu_custom_call.1']
  %s0 = inlined_call_operand.vmem [shape: f32[2,4,256], index: 0, kind: input, shape index: {}]
  %s1 = inlined_call_operand.vmem [shape: bf16[2,128,16], index: 1, kind: input, shape index: {}]
  %s2 = inlined_call_operand.vmem [shape: bf16[2,16,128], index: 2, kind: input, shape index: {}]
  %s3 = inlined_call_operand.vmem [shape: bf16[16,4], index: 3, kind: input, shape index: {}]
  %s4 = inlined_call_operand.vmem [shape: f32[16,1], index: 4, kind: input, shape index: {}]
  %s5 = inlined_call_operand.vmem [shape: f32[4,1], index: 5, kind: input, shape index: {}]
  %s6 = inlined_call_operand.<no memory space> [shape: f32[1,1], index: 6, kind: input, shape index: {}]
  %s7 = inlined_call_operand.hbm [shape: f32[2,4,256], index: 7, kind: output, shape index: {}]
  %s8 = sld [smem:[#allocation0]]
  $region61: #{tpu_custom_call.1} parent=0
    _
  %s10 = ssub.s32 1, %s8
  %s11 = scalar_select 0, %s10, %s8
  %12 = sst [smem:[#allocation2]] %s6
  $region1: #{tpu_custom_call.1} parent=0
    #allocation3 [shape = 'u8[4096]{0}', space=vmem, size = 0x1000, scoped, tag = 'output window, operand 0']
    #allocation4 [shape = 's32[2]{0}', space=sflag, size = 0x8, scoped, tag = 'scoped memory for tpu_custom_call.1']
    %13 = vsyncpa [#allocation4], 0
    %s14 = scalar_lea.sflag [#allocation4], 1
    %15 = vsyncpa %s14, 0
    loop: start=0, step=1, limit=6
    $region2: #{tpu_custom_call.1} parent=1 // loop_pre_header
      _
    $region3: #{tpu_custom_call.1} parent=1 // loop_header
      %s17 = sphi 0, %s21
      %p18 = scmp.ge.s32.totalorder %s17, 6
      %s24 = sphi 0, %s36
      %s25 = sphi 0, %s32
      %s26 = sphi 0, %s24
      %s27 = sphi 0, %s25
      %s28 = sphi 0, %s26
      %s29 = sphi 0, %s27
      %s41 = sphi 0, %s43
      %s44 = sphi 0, %s41
      %s45 = sphi 0, %s44
      %s61 = sphi 0, %s45
      %s67 = sphi 0, %s69
      %s70 = sphi 0, %s67
      %s71 = sphi 0, %s70
      %s87 = sphi 0, %s71
      %s93 = sphi 0, %s95
      %s96 = sphi 0, %s93
      %s97 = sphi 0, %s96
      %s113 = sphi 0, %s97
      %s117 = sphi 0, %s117
      %s119 = sphi 0, %s117
      %s120 = sphi 0, %s119
      %s134 = sphi 0, %s120
      %s138 = sphi 0, %s138
      %s140 = sphi 0, %s138
      %s141 = sphi 0, %s140
      %s155 = sphi 0, %s141
      %s159 = sphi 0, %s159
      %s161 = sphi 0, %s159
      %s162 = sphi 0, %s161
      %s176 = sphi 0, %s162
      %s180 = sphi 0, %s180
      %s182 = sphi 0, %s180
      %s183 = sphi 0, %s182
      %s197 = sphi 0, %s183
      %s205 = sphi 0, %s207
      %s208 = sphi 0, %s205
      %s209 = sphi 0, %s208
      %s225 = sphi 0, %s209
    $region4: #{tpu_custom_call.1} parent=1 // loop_header_branch
      %20 = sbr.rel (%p18) target = $region8
    $region5: #{tpu_custom_call.1} parent=1 // loop_body
      %s22 = ssub.s32 %s17, 1
      %s23 = ssub.s32 %s17, 2
      %s30 = sadd.s32 1, %s25
      %p31 = scmp.ge.s32.totalorder %s30, 2
      %s32 = scalar_select %p31, 0, %s30
      %s33 = sadd.s32 1, %s24
      %s34 = scalar_select %p31, %s33, %s24
      %p35 = scmp.ge.s32.totalorder %s34, 2
      %s36 = scalar_select %p35, 0, %s34
      %s37 = ssub.s32 %s24, %s36
      %s38 = ssub.s32 %s25, %s32
      %s39 = sor.u32 %s37, %s38
      %p40 = scmp.eq.s32.totalorder %s39, 0
      %s42 = sadd.s32 %s41, 1
      %s43 = scalar_select %p40, %s41, %s42
      %p46 = pneg %p40
      %p47 = scmp.eq.s32.totalorder %s17, 3
      %p48 = por %p46, %p47
      %p49 = scmp.ne.s32.totalorder %s41, %s44
      %p50 = scmp.eq.s32.totalorder %s17, 0
      %p51 = por %p49, %p50
      %p52 = scmp.ne.s32.totalorder %s41, %s44
      %p53 = scmp.eq.s32.totalorder %s22, 3
      %p54 = por %p52, %p53
      %p55 = scmp.ne.s32.totalorder %s44, %s45
      %p56 = scmp.eq.s32.totalorder %s22, 0
      %p57 = por %p55, %p56
      %p58 = scmp.ne.s32.totalorder %s44, %s45
      %p59 = scmp.eq.s32.totalorder %s23, 3
      %p60 = por %p58, %p59
      %p62 = scmp.ne.s32.totalorder %s45, %s61
      %p63 = scmp.eq.s32.totalorder %s23, 0
      %p64 = por %p62, %p63
      %s65 = ssub.s32 %s24, %s36
      %p66 = scmp.eq.s32.totalorder %s65, 0
      %s68 = sadd.s32 %s67, 1
      %s69 = scalar_select %p66, %s67, %s68
      %p72 = pneg %p66
      %p73 = scmp.eq.s32.totalorder %s17, 3
      %p74 = por %p72, %p73
      %p75 = scmp.ne.s32.totalorder %s67, %s70
      %p76 = scmp.eq.s32.totalorder %s17, 0
      %p77 = por %p75, %p76
      %p78 = scmp.ne.s32.totalorder %s67, %s70
      %p79 = scmp.eq.s32.totalorder %s22, 3
      %p80 = por %p78, %p79
      %p81 = scmp.ne.s32.totalorder %s70, %s71
      %p82 = scmp.eq.s32.totalorder %s22, 0
      %p83 = por %p81, %p82
      %p84 = scmp.ne.s32.totalorder %s70, %s71
      %p85 = scmp.eq.s32.totalorder %s23, 3
      %p86 = por %p84, %p85
      %p88 = scmp.ne.s32.totalorder %s71, %s87
      %p89 = scmp.eq.s32.totalorder %s23, 0
      %p90 = por %p88, %p89
      %s91 = ssub.s32 %s24, %s36
      %p92 = scmp.eq.s32.totalorder %s91, 0
      %s94 = sadd.s32 %s93, 1
      %s95 = scalar_select %p92, %s93, %s94
      %p98 = pneg %p92
      %p99 = scmp.eq.s32.totalorder %s17, 3
      %p100 = por %p98, %p99
      %p101 = scmp.ne.s32.totalorder %s93, %s96
      %p102 = scmp.eq.s32.totalorder %s17, 0
      %p103 = por %p101, %p102
      %p104 = scmp.ne.s32.totalorder %s93, %s96
      %p105 = scmp.eq.s32.totalorder %s22, 3
      %p106 = por %p104, %p105
      %p107 = scmp.ne.s32.totalorder %s96, %s97
      %p108 = scmp.eq.s32.totalorder %s22, 0
      %p109 = por %p107, %p108
      %p110 = scmp.ne.s32.totalorder %s96, %s97
      %p111 = scmp.eq.s32.totalorder %s23, 3
      %p112 = por %p110, %p111
      %p114 = scmp.ne.s32.totalorder %s97, %s113
      %p115 = scmp.eq.s32.totalorder %s23, 0
      %p116 = por %p114, %p115
      %s118 = sadd.s32 %s117, 1
      %p121 = scmp.eq.s32.totalorder %s17, 3
      %p122 = scmp.ne.s32.totalorder %s117, %s119
      %p123 = scmp.eq.s32.totalorder %s17, 0
      %p124 = por %p122, %p123
      %p125 = scmp.ne.s32.totalorder %s117, %s119
      %p126 = scmp.eq.s32.totalorder %s22, 3
      %p127 = por %p125, %p126
      %p128 = scmp.ne.s32.totalorder %s119, %s120
      %p129 = scmp.eq.s32.totalorder %s22, 0
      %p130 = por %p128, %p129
      %p131 = scmp.ne.s32.totalorder %s119, %s120
      %p132 = scmp.eq.s32.totalorder %s23, 3
      %p133 = por %p131, %p132
      %p135 = scmp.ne.s32.totalorder %s120, %s134
      %p136 = scmp.eq.s32.totalorder %s23, 0
      %p137 = por %p135, %p136
      %s139 = sadd.s32 %s138, 1
      %p142 = scmp.eq.s32.totalorder %s17, 3
      %p143 = scmp.ne.s32.totalorder %s138, %s140
      %p144 = scmp.eq.s32.totalorder %s17, 0
      %p145 = por %p143, %p144
      %p146 = scmp.ne.s32.totalorder %s138, %s140
      %p147 = scmp.eq.s32.totalorder %s22, 3
      %p148 = por %p146, %p147
      %p149 = scmp.ne.s32.totalorder %s140, %s141
      %p150 = scmp.eq.s32.totalorder %s22, 0
      %p151 = por %p149, %p150
      %p152 = scmp.ne.s32.totalorder %s140, %s141
      %p153 = scmp.eq.s32.totalorder %s23, 3
      %p154 = por %p152, %p153
      %p156 = scmp.ne.s32.totalorder %s141, %s155
      %p157 = scmp.eq.s32.totalorder %s23, 0
      %p158 = por %p156, %p157
      %s160 = sadd.s32 %s159, 1
      %p163 = scmp.eq.s32.totalorder %s17, 3
      %p164 = scmp.ne.s32.totalorder %s159, %s161
      %p165 = scmp.eq.s32.totalorder %s17, 0
      %p166 = por %p164, %p165
      %p167 = scmp.ne.s32.totalorder %s159, %s161
      %p168 = scmp.eq.s32.totalorder %s22, 3
      %p169 = por %p167, %p168
      %p170 = scmp.ne.s32.totalorder %s161, %s162
      %p171 = scmp.eq.s32.totalorder %s22, 0
      %p172 = por %p170, %p171
      %p173 = scmp.ne.s32.totalorder %s161, %s162
      %p174 = scmp.eq.s32.totalorder %s23, 3
      %p175 = por %p173, %p174
      %p177 = scmp.ne.s32.totalorder %s162, %s176
      %p178 = scmp.eq.s32.totalorder %s23, 0
      %p179 = por %p177, %p178
      %s181 = sadd.s32 %s180, 1
      %p184 = scmp.eq.s32.totalorder %s17, 3
      %p185 = scmp.ne.s32.totalorder %s180, %s182
      %p186 = scmp.eq.s32.totalorder %s17, 0
      %p187 = por %p185, %p186
      %p188 = scmp.ne.s32.totalorder %s180, %s182
      %p189 = scmp.eq.s32.totalorder %s22, 3
      %p190 = por %p188, %p189
      %p191 = scmp.ne.s32.totalorder %s182, %s183
      %p192 = scmp.eq.s32.totalorder %s22, 0
      %p193 = por %p191, %p192
      %p194 = scmp.ne.s32.totalorder %s182, %s183
      %p195 = scmp.eq.s32.totalorder %s23, 3
      %p196 = por %p194, %p195
      %p198 = scmp.ne.s32.totalorder %s183, %s197
      %p199 = scmp.eq.s32.totalorder %s23, 0
      %p200 = por %p198, %p199
      %s201 = ssub.s32 %s24, %s36
      %s202 = ssub.s32 %s25, %s32
      %s203 = sor.u32 %s201, %s202
      %p204 = scmp.eq.s32.totalorder %s203, 0
      %s206 = sadd.s32 %s205, 1
      %s207 = scalar_select %p204, %s205, %s206
      %p210 = pneg %p204
      %p211 = scmp.eq.s32.totalorder %s17, 3
      %p212 = por %p210, %p211
      %p213 = scmp.ne.s32.totalorder %s205, %s208
      %p214 = scmp.eq.s32.totalorder %s17, 0
      %p215 = por %p213, %p214
      %p216 = scmp.ne.s32.totalorder %s205, %s208
      %p217 = scmp.eq.s32.totalorder %s22, 3
      %p218 = por %p216, %p217
      %p219 = scmp.ne.s32.totalorder %s208, %s209
      %p220 = scmp.eq.s32.totalorder %s22, 0
      %p221 = por %p219, %p220
      %p222 = scmp.ne.s32.totalorder %s208, %s209
      %p223 = scmp.eq.s32.totalorder %s23, 3
      %p224 = por %p222, %p223
      %p226 = scmp.ne.s32.totalorder %s209, %s225
      %p227 = scmp.eq.s32.totalorder %s23, 0
      %p228 = por %p226, %p227
      %p229 = scmp.le.s32.totalorder 1, %s17
      %p230 = scmp.lt.s32.totalorder %s17, 5
      %p231 = pnand %p229, %p230
      %p232 = pneg %p231
      // Predicated region
      $region9: #{tpu_custom_call.1} parent=5 // pred_check
        _
      $region10: #{tpu_custom_call.1} parent=5 // pred_check_branch
        %234 = sbr.rel (%p231) target = $region12
      $region11: #{tpu_custom_call.1} parent=5 // pred_region
        %s235 = ssub.s32 %s17, 1
        // Predicated region
        $region13: #{tpu_custom_call.1} parent=11 // pred_check
          %p236 = pneg %p130
        $region14: #{tpu_custom_call.1} parent=11 // pred_check_branch
          %238 = sbr.rel (%p236) target = $region16
        $region15: #{tpu_custom_call.1} parent=11 // pred_region
          _
        $region16: #{tpu_custom_call.1} parent=11 // pred_fallthru
          _
        // Predicated region
        $region17: #{tpu_custom_call.1} parent=11 // pred_check
          %p239 = pneg %p151
        $region18: #{tpu_custom_call.1} parent=11 // pred_check_branch
          %241 = sbr.rel (%p239) target = $region20
        $region19: #{tpu_custom_call.1} parent=11 // pred_region
          _
        $region20: #{tpu_custom_call.1} parent=11 // pred_fallthru
          _
        // Predicated region
        $region21: #{tpu_custom_call.1} parent=11 // pred_check
          %p242 = pneg %p172
        $region22: #{tpu_custom_call.1} parent=11 // pred_check_branch
          %244 = sbr.rel (%p242) target = $region24
        $region23: #{tpu_custom_call.1} parent=11 // pred_region
          _
        $region24: #{tpu_custom_call.1} parent=11 // pred_fallthru
          _
        // Predicated region
        $region25: #{tpu_custom_call.1} parent=11 // pred_check
          %p245 = pneg %p193
        $region26: #{tpu_custom_call.1} parent=11 // pred_check_branch
          %247 = sbr.rel (%p245) target = $region28
        $region27: #{tpu_custom_call.1} parent=11 // pred_region
          _
        $region28: #{tpu_custom_call.1} parent=11 // pred_fallthru
          _
      $region12: #{tpu_custom_call.1} parent=5 // pred_fallthru
        _
      %p248 = scmp.lt.s32.totalorder %s17, 4
      // Predicated region
      $region29: #{tpu_custom_call.1} parent=5 // pred_check
        %p249 = pneg %p248
      $region30: #{tpu_custom_call.1} parent=5 // pred_check_branch
        %251 = sbr.rel (%p249) target = $region32
      $region31: #{tpu_custom_call.1} parent=5 // pred_region
        // Predicated region
        $region33: #{tpu_custom_call.1} parent=31 // pred_check
          %p252 = pneg %p51
        $region34: #{tpu_custom_call.1} parent=31 // pred_check_branch
          %254 = sbr.rel (%p252) target = $region36
        $region35: #{tpu_custom_call.1} parent=31 // pred_region
          %p255 = scmp.lt.s32.totalorder %s24, 1
          %s256 = scalar_select %p255, %s24, 1
          %p257 = scmp.lt.s32.totalorder %s25, 1
          %s258 = scalar_select %p257, %s25, 1
          %s259 = smul.addr %s256, 2
          %s260 = sadd.s32 %s258, %s259
          %s261 = smul.addr %s260, 4
          %s262 = scalar_lea.vmem %s0, %s261
        $region36: #{tpu_custom_call.1} parent=31 // pred_fallthru
          _
        // Predicated region
        $region37: #{tpu_custom_call.1} parent=31 // pred_check
          %p263 = pneg %p77
        $region38: #{tpu_custom_call.1} parent=31 // pred_check_branch
          %265 = sbr.rel (%p263) target = $region40
        $region39: #{tpu_custom_call.1} parent=31 // pred_region
          %p266 = scmp.lt.s32.totalorder %s24, 1
          %s267 = scalar_select %p266, %s24, 1
          %s268 = smul.addr %s267, 16
          %s269 = smul.addr %s268, 4
          %s270 = scalar_lea.vmem %s1, %s269
        $region40: #{tpu_custom_call.1} parent=31 // pred_fallthru
          _
        // Predicated region
        $region41: #{tpu_custom_call.1} parent=31 // pred_check
          %p271 = pneg %p103
        $region42: #{tpu_custom_call.1} parent=31 // pred_check_branch
          %273 = sbr.rel (%p271) target = $region44
        $region43: #{tpu_custom_call.1} parent=31 // pred_region
          %p274 = scmp.lt.s32.totalorder %s24, 1
          %s275 = scalar_select %p274, %s24, 1
          %s276 = smul.addr %s275, 2
          %s277 = smul.addr %s276, 4
          %s278 = scalar_lea.vmem %s2, %s277
        $region44: #{tpu_custom_call.1} parent=31 // pred_fallthru
          _
      $region32: #{tpu_custom_call.1} parent=5 // pred_fallthru
        _
      %p279 = scmp.le.s32.totalorder 1, %s17
      %p280 = scmp.lt.s32.totalorder %s17, 5
      %p281 = pnand %p279, %p280
      %p282 = pneg %p281
      // Predicated region
      $region45: #{tpu_custom_call.1} parent=5 // pred_check
        _
      $region46: #{tpu_custom_call.1} parent=5 // pred_check_branch
        %284 = sbr.rel (%p281) target = $region48
      $region47: #{tpu_custom_call.1} parent=5 // pred_region
        %s285 = ssub.s32 %s17, 1
        %p286 = scmp.lt.s32.totalorder %s26, 1
        %s287 = scalar_select %p286, %s26, 1
        %p288 = scmp.lt.s32.totalorder %s27, 1
        %s289 = scalar_select %p288, %s27, 1
        %s290 = smul.addr %s287, 2
        %s291 = sadd.s32 %s289, %s290
        %s292 = smul.addr %s291, 4
        %s293 = scalar_lea.vmem %s0, %s292
        %p294 = pneg %p57
        %p295 = pneg %p54
        %p296 = scmp.lt.s32.totalorder %s26, 1
        %s297 = scalar_select %p296, %s26, 1
        %s298 = smul.addr %s297, 16
        %s299 = smul.addr %s298, 4
        %s300 = scalar_lea.vmem %s1, %s299
        %p301 = pneg %p83
        %p302 = pneg %p80
        %p303 = scmp.lt.s32.totalorder %s26, 1
        %s304 = scalar_select %p303, %s26, 1
        %s305 = smul.addr %s304, 2
        %s306 = smul.addr %s305, 4
        %s307 = scalar_lea.vmem %s2, %s306
        %p308 = pneg %p109
        %p309 = pneg %p106
        %p310 = pneg %p130
        %p311 = pneg %p127
        %p312 = pneg %p151
        %p313 = pneg %p148
        %p314 = pneg %p172
        %p315 = pneg %p169
        %p316 = pneg %p193
        %p317 = pneg %p190
        %p318 = pneg %p221
        %p319 = pneg %p218
        %s320 = sand.u32 %s208, 1
        %s321 = scalar_lea.sflag [#allocation4], %s320
        %s322 = sand.u32 %s208, 1
        %s323 = smul.addr %s322, 4
        %s324 = scalar_lea.vmem [#allocation3], %s323
        %p325 = scmp.lt.s32.totalorder %s26, 1
        %s326 = scalar_select %p325, %s26, 1
        %p327 = scmp.lt.s32.totalorder %s27, 1
        %s328 = scalar_select %p327, %s27, 1
        %s329 = smul.addr %s326, 2
        %s330 = sadd.s32 %s328, %s329
        %s331 = smul.addr %s330, 4
        %s332 = scalar_lea.vmem %s0, %s331
        %p333 = scmp.lt.s32.totalorder %s26, 1
        %s334 = scalar_select %p333, %s26, 1
        %s335 = smul.addr %s334, 16
        %s336 = smul.addr %s335, 4
        %s337 = scalar_lea.vmem %s1, %s336
        %p338 = scmp.lt.s32.totalorder %s26, 1
        %s339 = scalar_select %p338, %s26, 1
        %s340 = smul.addr %s339, 2
        %s341 = smul.addr %s340, 4
        %s342 = scalar_lea.vmem %s2, %s341
        %v344 = vld [vmem:[%s332] sm:$0xf]
        %v345 = vld [vmem:[%s3] sm:$0xf]
        %v346 = vld [vmem:[%s3 + $0x4] sm:$0xf]
        %v347 = vpack.c.bf16 %v344, %v344
        %v348 = vld [vmem:[%s4] sm:$0xff]
        %v349 = vld [vmem:[%s4 + $0x8] sm:$0xff]
        %351 = vset.pattern.permute.xlu0 0
        %352 = vperm.xlu0 %351, %v348
        %v353 = vpop.permute.xlu0 %352
        %356 = vset.pattern.permute.xlu0 0
        %357 = vperm.xlu0 %356, %v349
        %v358 = vpop.permute.xlu0 %357
        %v362 = vunpack.c.l.b16 %v345
        %v363 = vunpack.c.l.b16 %v346
        %v364 = vpack.c.b16 %v363, %v362
        %vm365 = vcmask 31744
        %v367 = vsel %vm365, %v364, 0
        %vm369 = vcmask 1041408
        %v371 = vsel %vm369, %v347, 0
        %373 = vmatprep.subr.bf16.mxu0 0
        %374 = vmatpush1.bf16.msra.mxu0 %v371
        %375 = vmatprep.subr.bf16.mxu0 0
        %376 = vmatpush1.bf16.msra.mxu0 0
        %377 = vmatprep.subr.bf16.mxu0 0
        %378 = vmatpush1.bf16.msra.mxu0 0
        %379 = vmatprep.subr.bf16.mxu0 0
        %380 = vmatpush1.bf16.msra.mxu0 0
        %381 = vmatprep.subr.bf16.mxu0 0
        %382 = vmatpush1.bf16.msra.mxu0 0
        %383 = vmatprep.subr.bf16.mxu0 0
        %384 = vmatpush1.bf16.msra.mxu0 0
        %385 = vmatprep.subr.bf16.mxu0 0
        %386 = vmatpush1.bf16.msra.mxu0 0
        %387 = vmatprep.subr.bf16.mxu0 0
        %388 = vmatpush1.bf16.msra.mxu0 0
        %389 = vmatprep.subr.bf16.mxu0 0
        %390 = vmatpush1.bf16.msra.mxu0 0
        %391 = vmatprep.subr.bf16.mxu0 0
        %392 = vmatpush1.bf16.msra.mxu0 0
        %393 = vmatprep.subr.bf16.mxu0 0
        %394 = vmatpush1.bf16.msra.mxu0 0
        %395 = vmatprep.subr.bf16.mxu0 0
        %396 = vmatpush1.bf16.msra.mxu0 0
        %397 = vmatprep.subr.bf16.mxu0 0
        %398 = vmatpush1.bf16.msra.mxu0 0
        %399 = vmatprep.subr.bf16.mxu0 0
        %400 = vmatpush1.bf16.msra.mxu0 0
        %401 = vmatprep.subr.bf16.mxu0 0
        %402 = vmatpush1.bf16.msra.mxu0 0
        %403 = vmatprep.subr.bf16.mxu0 0
        %404 = vmatpush1.bf16.msra.mxu0 0
        %405 = vmatprep.mubr.bf16.mxu0 0
        %406 = vmatmul.mubr.bf16.gmra.mrb[0].mxu0 %v367
        %v407 = vpop.f32.mrb[0].mxu0
        %v408 = vadd.f32 %v353, %v407
        %v409 = vpop.f32.mrb[0].mxu0
        %v410 = vpop.f32.mrb[0].mxu0
        %v411 = vadd.f32 %v358, %v410
        %v412 = vpop.f32.mrb[0].mxu0
        %413 = vdwg.mxu0
        %v414 = vpack.c.bf16 %v411, %v408
        %v415 = vld [vmem:[%s337] sm:$0xf]
        %v416 = vld [vmem:[%s337 + $0x4] sm:$0xf]
        %v417 = vld [vmem:[%s337 + $0x8] sm:$0xf]
        %v418 = vld [vmem:[%s337 + $0xc] sm:$0xf]
        %v419 = vld [vmem:[%s337 + $0x10] sm:$0xf]
        %v420 = vld [vmem:[%s337 + $0x14] sm:$0xf]
        %v421 = vld [vmem:[%s337 + $0x18] sm:$0xf]
        %v422 = vld [vmem:[%s337 + $0x1c] sm:$0xf]
        %v423 = vld [vmem:[%s337 + $0x20] sm:$0xf]
        %v424 = vld [vmem:[%s337 + $0x24] sm:$0xf]
        %v425 = vld [vmem:[%s337 + $0x28] sm:$0xf]
        %v426 = vld [vmem:[%s337 + $0x2c] sm:$0xf]
        %v427 = vld [vmem:[%s337 + $0x30] sm:$0xf]
        %v428 = vld [vmem:[%s337 + $0x34] sm:$0xf]
        %v429 = vld [vmem:[%s337 + $0x38] sm:$0xf]
        %v430 = vld [vmem:[%s337 + $0x3c] sm:$0xf]
        %v447 = vunpack.c.l.b16 %v415
        %v448 = vunpack.c.l.b16 %v416
        %v449 = vunpack.c.l.b16 %v417
        %v450 = vunpack.c.l.b16 %v418
        %v451 = vunpack.c.l.b16 %v419
        %v452 = vunpack.c.l.b16 %v420
        %v453 = vunpack.c.l.b16 %v421
        %v454 = vunpack.c.l.b16 %v422
        %v455 = vunpack.c.l.b16 %v423
        %v456 = vunpack.c.l.b16 %v424
        %v457 = vunpack.c.l.b16 %v425
        %v458 = vunpack.c.l.b16 %v426
        %v459 = vunpack.c.l.b16 %v427
        %v460 = vunpack.c.l.b16 %v428
        %v461 = vunpack.c.l.b16 %v429
        %v462 = vunpack.c.l.b16 %v430
        %v463 = vpack.c.b16 %v448, %v447
        %v464 = vpack.c.b16 %v450, %v449
        %v465 = vpack.c.b16 %v452, %v451
        %v466 = vpack.c.b16 %v454, %v453
        %v467 = vpack.c.b16 %v456, %v455
        %v468 = vpack.c.b16 %v458, %v457
        %v469 = vpack.c.b16 %v460, %v459
        %v470 = vpack.c.b16 %v462, %v461
        %vm471 = vcmask 130048
        %v473 = vsel %vm471, %v463, 0
        %v476 = vsel %vm471, %v464, 0
        %v479 = vsel %vm471, %v465, 0
        %v482 = vsel %vm471, %v466, 0
        %v485 = vsel %vm471, %v467, 0
        %v488 = vsel %vm471, %v468, 0
        %v491 = vsel %vm471, %v469, 0
        %v494 = vsel %vm471, %v470, 0
        %496 = vmatprep.subr.bf16.mxu0 0
        %497 = vmatpush1.bf16.msra.mxu0 %v414
        %498 = vmatprep.subr.bf16.mxu0 0
        %499 = vmatpush1.bf16.msra.mxu0 0
        %500 = vmatprep.subr.bf16.mxu0 0
        %501 = vmatpush1.bf16.msra.mxu0 0
        %502 = vmatprep.subr.bf16.mxu0 0
        %503 = vmatpush1.bf16.msra.mxu0 0
        %504 = vmatprep.subr.bf16.mxu0 0
        %505 = vmatpush1.bf16.msra.mxu0 0
        %506 = vmatprep.subr.bf16.mxu0 0
        %507 = vmatpush1.bf16.msra.mxu0 0
        %508 = vmatprep.subr.bf16.mxu0 0
        %509 = vmatpush1.bf16.msra.mxu0 0
        %510 = vmatprep.subr.bf16.mxu0 0
        %511 = vmatpush1.bf16.msra.mxu0 0
        %512 = vmatprep.subr.bf16.mxu0 0
        %513 = vmatpush1.bf16.msra.mxu0 0
        %514 = vmatprep.subr.bf16.mxu0 0
        %515 = vmatpush1.bf16.msra.mxu0 0
        %516 = vmatprep.subr.bf16.mxu0 0
        %517 = vmatpush1.bf16.msra.mxu0 0
        %518 = vmatprep.subr.bf16.mxu0 0
        %519 = vmatpush1.bf16.msra.mxu0 0
        %520 = vmatprep.subr.bf16.mxu0 0
        %521 = vmatpush1.bf16.msra.mxu0 0
        %522 = vmatprep.subr.bf16.mxu0 0
        %523 = vmatpush1.bf16.msra.mxu0 0
        %524 = vmatprep.subr.bf16.mxu0 0
        %525 = vmatpush1.bf16.msra.mxu0 0
        %526 = vmatprep.subr.bf16.mxu0 0
        %527 = vmatpush1.bf16.msra.mxu0 0
        %528 = vmatprep.mubr.bf16.mxu0 0
        %529 = vmatmul.mubr.bf16.gmra.mrb[0].mxu0 %v473
        %v530 = vpop.f32.mrb[0].mxu0
        %v531 = vadd.f32 0.0, %v530
        %v532 = vpop.f32.mrb[0].mxu0
        %v533 = vpop.f32.mrb[0].mxu0
        %v534 = vadd.f32 0.0, %v533
        %v535 = vpop.f32.mrb[0].mxu0
        %536 = vmatprep.mubr.bf16.mxu0 0
        %537 = vmatmul.mubr.bf16.gmra.mrb[0].mxu0 %v476
        %v538 = vpop.f32.mrb[0].mxu0
        %v539 = vadd.f32 0.0, %v538
        %v540 = vpop.f32.mrb[0].mxu0
        %v541 = vpop.f32.mrb[0].mxu0
        %v542 = vadd.f32 0.0, %v541
        %v543 = vpop.f32.mrb[0].mxu0
        %544 = vmatprep.mubr.bf16.mxu0 0
        %545 = vmatmul.mubr.bf16.gmra.mrb[0].mxu0 %v479
        %v546 = vpop.f32.mrb[0].mxu0
        %v547 = vadd.f32 0.0, %v546
        %v548 = vpop.f32.mrb[0].mxu0
        %v549 = vpop.f32.mrb[0].mxu0
        %v550 = vadd.f32 0.0, %v549
        %v551 = vpop.f32.mrb[0].mxu0
        %552 = vmatprep.mubr.bf16.mxu0 0
        %553 = vmatmul.mubr.bf16.gmra.mrb[0].mxu0 %v482
        %v554 = vpop.f32.mrb[0].mxu0
        %v555 = vadd.f32 0.0, %v554
        %v556 = vpop.f32.mrb[0].mxu0
        %v557 = vpop.f32.mrb[0].mxu0
        %v558 = vadd.f32 0.0, %v557
        %v559 = vpop.f32.mrb[0].mxu0
        %560 = vmatprep.mubr.bf16.mxu0 0
        %561 = vmatmul.mubr.bf16.gmra.mrb[0].mxu0 %v485
        %v562 = vpop.f32.mrb[0].mxu0
        %v563 = vadd.f32 0.0, %v562
        %v564 = vpop.f32.mrb[0].mxu0
        %v565 = vpop.f32.mrb[0].mxu0
        %v566 = vadd.f32 0.0, %v565
        %v567 = vpop.f32.mrb[0].mxu0
        %568 = vmatprep.mubr.bf16.mxu0 0
        %569 = vmatmul.mubr.bf16.gmra.mrb[0].mxu0 %v488
        %v570 = vpop.f32.mrb[0].mxu0
        %v571 = vadd.f32 0.0, %v570
        %v572 = vpop.f32.mrb[0].mxu0
        %v573 = vpop.f32.mrb[0].mxu0
        %v574 = vadd.f32 0.0, %v573
        %v575 = vpop.f32.mrb[0].mxu0
        %576 = vmatprep.mubr.bf16.mxu0 0
        %577 = vmatmul.mubr.bf16.gmra.mrb[0].mxu0 %v491
        %v578 = vpop.f32.mrb[0].mxu0
        %v579 = vadd.f32 0.0, %v578
        %v580 = vpop.f32.mrb[0].mxu0
        %v581 = vpop.f32.mrb[0].mxu0
        %v582 = vadd.f32 0.0, %v581
        %v583 = vpop.f32.mrb[0].mxu0
        %584 = vmatprep.mubr.bf16.mxu0 0
        %585 = vmatmul.mubr.bf16.gmra.mrb[0].mxu0 %v494
        %v586 = vpop.f32.mrb[0].mxu0
        %v587 = vadd.f32 0.0, %v586
        %v588 = vpop.f32.mrb[0].mxu0
        %v589 = vpop.f32.mrb[0].mxu0
        %v590 = vadd.f32 0.0, %v589
        %v591 = vpop.f32.mrb[0].mxu0
        %592 = vdwg.mxu0
        %v593 = vmax.f32 %v531, %v547
        %v594 = vmax.f32 %v534, %v550
        %v595 = vmax.f32 %v539, %v555
        %v596 = vmax.f32 %v542, %v558
        %v597 = vmax.f32 %v593, %v563
        %v598 = vmax.f32 %v594, %v566
        %v599 = vmax.f32 %v595, %v571
        %v600 = vmax.f32 %v596, %v574
        %v601 = vmax.f32 %v597, %v579
        %v602 = vmax.f32 %v598, %v582
        %v603 = vmax.f32 %v599, %v587
        %v604 = vmax.f32 %v600, %v590
        %v605 = vmax.f32 %v601, %v602
        %v606 = vmax.f32 %v603, %v604
        %v607 = vmax.f32 %v605, %v606
        %v608 = vrot.slane %v607, 4
        %v609 = vmax.f32 %v607, %v608
        %v610 = vrot.slane %v609, 2
        %v611 = vmax.f32 %v609, %v610
        %v612 = vrot.slane %v611, 1
        %v613 = vmax.f32 %v611, %v612
        %v614 = vsub.f32 %v531, %v613
        %v615 = vsub.f32 %v534, %v613
        %v616 = vsub.f32 %v539, %v613
        %v617 = vsub.f32 %v542, %v613
        %v618 = vsub.f32 %v547, %v613
        %v619 = vsub.f32 %v550, %v613
        %v620 = vsub.f32 %v555, %v613
        %v621 = vsub.f32 %v558, %v613
        %v622 = vsub.f32 %v563, %v613
        %v623 = vsub.f32 %v566, %v613
        %v624 = vsub.f32 %v571, %v613
        %v625 = vsub.f32 %v574, %v613
        %v626 = vsub.f32 %v579, %v613
        %v627 = vsub.f32 %v582, %v613
        %v628 = vsub.f32 %v587, %v613
        %v629 = vsub.f32 %v590, %v613
        %v630 = vmul.f32 %v614, 1.442695
        %v631 = vpow.pop %v630
        %v632 = vmul.f32 %v615, 1.442695
        %v633 = vpow.pop %v632
        %v634 = vmul.f32 %v616, 1.442695
        %v635 = vpow.pop %v634
        %v636 = vmul.f32 %v617, 1.442695
        %v637 = vpow.pop %v636
        %v638 = vmul.f32 %v618, 1.442695
        %v639 = vpow.pop %v638
        %v640 = vmul.f32 %v619, 1.442695
        %v641 = vpow.pop %v640
        %v642 = vmul.f32 %v620, 1.442695
        %v643 = vpow.pop %v642
        %v644 = vmul.f32 %v621, 1.442695
        %v645 = vpow.pop %v644
        %v646 = vmul.f32 %v622, 1.442695
        %v647 = vpow.pop %v646
        %v648 = vmul.f32 %v623, 1.442695
        %v649 = vpow.pop %v648
        %v650 = vmul.f32 %v624, 1.442695
        %v651 = vpow.pop %v650
        %v652 = vmul.f32 %v625, 1.442695
        %v653 = vpow.pop %v652
        %v654 = vmul.f32 %v626, 1.442695
        %v655 = vpow.pop %v654
        %v656 = vmul.f32 %v627, 1.442695
        %v657 = vpow.pop %v656
        %v658 = vmul.f32 %v628, 1.442695
        %v659 = vpow.pop %v658
        %v660 = vmul.f32 %v629, 1.442695
        %v661 = vpow.pop %v660
        %v662 = vpack.c.bf16 %v633, %v631
        %v663 = vpack.c.bf16 %v637, %v635
        %v664 = vpack.c.bf16 %v641, %v639
        %v665 = vpack.c.bf16 %v645, %v643
        %v666 = vpack.c.bf16 %v649, %v647
        %v667 = vpack.c.bf16 %v653, %v651
        %v668 = vpack.c.bf16 %v657, %v655
        %v669 = vpack.c.bf16 %v661, %v659
        %v670 = vld [vmem:[%s342] sm:$0xf]
        %v671 = vld [vmem:[%s342 + $0x4] sm:$0xf]
        %v674 = vunpack.c.l.b16 %v670
        %v675 = vunpack.c.l.b16 %v671
        %v676 = vpack.c.b16 %v675, %v674
        %678 = vmatprep.subr.bf16.mxu0 0
        %679 = vmatpush1.bf16.msra.mxu0 %v662
        %680 = vmatprep.subr.bf16.mxu0 0
        %681 = vmatpush1.bf16.msra.mxu0 %v663
        %682 = vmatprep.subr.bf16.mxu0 0
        %683 = vmatpush1.bf16.msra.mxu0 %v664
        %684 = vmatprep.subr.bf16.mxu0 0
        %685 = vmatpush1.bf16.msra.mxu0 %v665
        %686 = vmatprep.subr.bf16.mxu0 0
        %687 = vmatpush1.bf16.msra.mxu0 %v666
        %688 = vmatprep.subr.bf16.mxu0 0
        %689 = vmatpush1.bf16.msra.mxu0 %v667
        %690 = vmatprep.subr.bf16.mxu0 0
        %691 = vmatpush1.bf16.msra.mxu0 %v668
        %692 = vmatprep.subr.bf16.mxu0 0
        %693 = vmatpush1.bf16.msra.mxu0 %v669
        %694 = vmatprep.subr.bf16.mxu0 0
        %695 = vmatpush1.bf16.msra.mxu0 0
        %696 = vmatprep.subr.bf16.mxu0 0
        %697 = vmatpush1.bf16.msra.mxu0 0
        %698 = vmatprep.subr.bf16.mxu0 0
        %699 = vmatpush1.bf16.msra.mxu0 0
        %700 = vmatprep.subr.bf16.mxu0 0
        %701 = vmatpush1.bf16.msra.mxu0 0
        %702 = vmatprep.subr.bf16.mxu0 0
        %703 = vmatpush1.bf16.msra.mxu0 0
        %704 = vmatprep.subr.bf16.mxu0 0
        %705 = vmatpush1.bf16.msra.mxu0 0
        %706 = vmatprep.subr.bf16.mxu0 0
        %707 = vmatpush1.bf16.msra.mxu0 0
        %708 = vmatprep.subr.bf16.mxu0 0
        %709 = vmatpush1.bf16.msra.mxu0 0
        %710 = vmatprep.mubr.bf16.mxu0 0
        %711 = vmatmul.mubr.bf16.gmra.mrb[0].mxu0 %v676
        %v712 = vpop.f32.mrb[0].mxu0
        %v713 = vadd.f32 0.0, %v712
        %v714 = vpop.f32.mrb[0].mxu0
        %v715 = vpop.f32.mrb[0].mxu0
        %v716 = vpop.f32.mrb[0].mxu0
        %717 = vdwg.mxu0
        %v718 = vrcp.pop %v713
        %v719 = vlaneseq
        %v720 = vshrl.u32 %v719, 7
        %v721 = vsub.s32 4, %v720
        %v722 = vrot.slane %v718, %v721
        %v723 = vmul.f32 %v713, %v722
        %v724 = vld [vmem:[%s5] sm:$0xf]
        %726 = vset.pattern.permute.xlu0 0
        %727 = vperm.xlu0 %726, %v724
        %v728 = vpop.permute.xlu0 %727
        %v730 = vmul.f32 %v728, %v344
        %vm731 = vcmask 1043456
        %v732 = vsel %vm731, %v730, 0.0
        %v733 = vrot.slane %v732, 4
        %v734 = vadd.f32 %v732, %v733
        %v735 = vrot.slane %v734, 2
        %v736 = vadd.f32 %v734, %v735
        %v737 = vrot.slane %v736, 1
        %v738 = vadd.f32 %v736, %v737
        %s739 = sld [smem:[#allocation2]]
        %v740 = vstv %s739
        %v741 = vadd.f32 %v738, %v740
        %v742 = vxor.u32 %v741, 2147483648
        %v743 = vmul.f32 %v742, 1.442695
        %v744 = vpow.pop %v743
        %v745 = vadd.f32 %v744, 1.0
        %v746 = vrcp.pop %v745
        %v747 = vmul.f32 1.0, %v746
        %v748 = vsub.f32 1.0, %v747
        %v749 = vmul.f32 %v748, %v723
        %v750 = vmul.f32 %v747, %v344
        %v751 = vadd.f32 %v749, %v750
        %752 = vst [vmem:[%s324] sm:$0xf] %v751
        %s753 = sand.u32 %s208, 1
        %s754 = scalar_lea.sflag [#allocation4], %s753
        %s755 = sand.u32 %s208, 1
        %s756 = smul.addr %s755, 4
        %s757 = scalar_lea.vmem [#allocation3], %s756
        // Predicated region
        $region49: #{tpu_custom_call.1} parent=47 // pred_check
          %p758 = pneg %p218
        $region50: #{tpu_custom_call.1} parent=47 // pred_check_branch
          %760 = sbr.rel (%p758) target = $region52
        $region51: #{tpu_custom_call.1} parent=47 // pred_region
          %s762 = ssub.s32 64, 64
          %763 = vsyncadd %s754, %s762
          %s764 = smul.addr %s26, 2
          %s765 = sadd.s32 %s27, %s764
          %s766 = smul.addr %s765, 64
          %s767 = scalar_lea.hbm %s7, %s766
          %s769 = sshll.u32 %s757, 4
          %s770 = int_to_ptr.vmem [resolvable:$true] %s769
          %772 = dma.vmem_to_hbm [thread:$0]  %s770, 64, %s767, %s754
        $region52: #{tpu_custom_call.1} parent=47 // pred_fallthru
          _
      $region48: #{tpu_custom_call.1} parent=5 // pred_fallthru
        _
      %p773 = scmp.le.s32.totalorder 2, %s17
      // Predicated region
      $region53: #{tpu_custom_call.1} parent=5 // pred_check
        %p774 = pneg %p773
      $region54: #{tpu_custom_call.1} parent=5 // pred_check_branch
        %776 = sbr.rel (%p774) target = $region56
      $region55: #{tpu_custom_call.1} parent=5 // pred_region
        %s777 = ssub.s32 %s17, 2
        // Predicated region
        $region57: #{tpu_custom_call.1} parent=55 // pred_check
          %p778 = pneg %p224
        $region58: #{tpu_custom_call.1} parent=55 // pred_check_branch
          %780 = sbr.rel (%p778) target = $region60
        $region59: #{tpu_custom_call.1} parent=55 // pred_region
          %s781 = sand.u32 %s209, 1
          %s782 = scalar_lea.sflag [#allocation4], %s781
          %s783 = sand.u32 %s209, 1
          %s784 = smul.addr %s783, 4
          %s785 = scalar_lea.vmem [#allocation3], %s784
          %786 = dma.done %s782, 64
        $region60: #{tpu_custom_call.1} parent=55 // pred_fallthru
          _
      $region56: #{tpu_custom_call.1} parent=5 // pred_fallthru
        _
    $region6: #{tpu_custom_call.1} parent=1 // loop_footer
      %s21 = sadd.s32 1, %s17
    $region7: #{tpu_custom_call.1} parent=1 // loop_footer_branch
      %16 = sbr.rel target = $region3
    $region8: #{tpu_custom_call.1} parent=1 // loop_exit
      _
    %787 = vsyncpa [#allocation4], 1
    %s788 = scalar_lea.sflag [#allocation4], 1
    %789 = vsyncpa %s788, 1

</llo_original>
